<compile_context>
chip_gen: v7x
topology: tpu7x:2x2x1
jax: 0.10.0
libtpu: 0.0.40
codegen_flags: <defaults>
</compile_context>

<pallas_src>
import functools

import jax
import jax.numpy as jnp
from jax.experimental import pallas as pl
from jax.experimental.pallas import tpu as pltpu

_LANE = 128
_SUBLANE = 8
_BLK_BUDGET_BYTES = 6 * 1024 * 1024   # per input block
_VMEM_LIMIT_BYTES = 40 * 1024 * 1024  # 2 inputs x 2 pipeline bufs x 6 MiB + small extras


def _make_kernel(use_l1: bool):
    def kernel(w_ref, o_ref, t_ref, part_ref):
        # w_ref:    (tr, 1)  f32 per-row weights (pre-scaled by w_norm[s] / (B*F*T))
        # o_ref:    (tr, tn) current (row-block, lane-chunk) tile of outputs
        # t_ref:    (tr, tn) matching tile of targets
        # part_ref: (1, tn)  lane-dense partial sum for this grid step
        diff = o_ref[...].astype(jnp.float32) - t_ref[...].astype(jnp.float32)
        d = jnp.abs(diff) if use_l1 else diff * diff
        part_ref[...] = jnp.sum(w_ref[...] * d, axis=0, keepdims=True)

    return kernel


@functools.partial(jax.jit, static_argnames=("distance",))
def multi_source_loss(outputs, targets, weights, distance: str = "l1"):
    """Weighted multi-source loss. outputs/targets: (B, S, F, T) or (S, F, T)."""
    dist = distance.lower()
    if dist not in ("l1", "l2"):
        raise ValueError(f"Unsupported distance: {distance!r} (expected 'l1' or 'l2').")

    if outputs.ndim == 3:
        outputs = outputs[None]
        targets = targets[None]
    if outputs.ndim != 4:
        raise ValueError("Unsupported tensor dimensions.")
    B, S, F, T = outputs.shape
    N = F * T
    R = B * S
    itemsize = jnp.dtype(outputs.dtype).itemsize

    # Fold weight normalization and the per-source mean 1/(B*F*T) into a per-row column:
    # row r = b*S + s  ->  w_norm[s] / (B*F*T).
    w = weights.astype(jnp.float32)
    w_scaled = w / jnp.sum(w) / float(B * N)
    w_row = jnp.tile(w_scaled, (B,)).reshape(R, 1)

    # Lane-dense 2-D layout (free, contiguous reshape).
    o = outputs.reshape(R, N)
    t = targets.reshape(R, N)

    # --- Tile sizing ----------------------------------------------------------------
    n_lanes = pl.cdiv(N, _LANE)
    n_pad128 = n_lanes * _LANE
    tn_floor = min(n_pad128, 4 * _LANE)  # keep per-row contiguous DMA segments >= ~2 KiB

    # Rows per block: as many as fit alongside a tn_floor-wide tile (multiple of 8);
    # only splits rows for very large B*S instead of letting tn collapse to 128.
    row_cap = max(_SUBLANE,
                  (_BLK_BUDGET_BYTES // (tn_floor * itemsize)) // _SUBLANE * _SUBLANE)
    if R <= row_cap:
        tr, nr = R, 1            # block == full row extent (valid even if R % 8 != 0)
    else:
        tr = row_cap
        nr = pl.cdiv(R, tr)

    # Lane chunk: largest 128-aligned width that fits the per-block byte budget.
    tn = min(n_pad128,
             max(_LANE, (_BLK_BUDGET_BYTES // (tr * itemsize)) // _LANE * _LANE))
    nc = pl.cdiv(n_pad128, tn)

    # Guarantee >= 2 grid steps when possible so double-buffering has something to
    # overlap and the "parallel" axes can shard across both v7x TensorCores.
    if nr * nc < 2 and n_lanes >= 2:
        tn = ((n_lanes + 1) // 2) * _LANE
        nc = pl.cdiv(n_pad128, tn)

    r_pad = nr * tr
    n_pad = nc * tn
    if (r_pad, n_pad) != (R, N):
        # Zero padding -> zero diff (and zero weight for padded rows) -> contributes nothing.
        o = jnp.pad(o, ((0, r_pad - R), (0, n_pad - N)))
        t = jnp.pad(t, ((0, r_pad - R), (0, n_pad - N)))
        w_row = jnp.pad(w_row, ((0, r_pad - R), (0, 0)))

    kernel = _make_kernel(dist == "l1")

    grid_spec = pltpu.PrefetchScalarGridSpec(
        num_scalar_prefetch=0,
        grid=(nr, nc),
        in_specs=[
            pl.BlockSpec((tr, 1), lambda i, j: (i, 0)),    # per-row weight column
            pl.BlockSpec((tr, tn), lambda i, j: (i, j)),   # outputs tile
            pl.BlockSpec((tr, tn), lambda i, j: (i, j)),   # targets tile
        ],
        out_specs=pl.BlockSpec((None, None, 1, tn), lambda i, j: (i, j, 0, 0)),
    )

    cost = pl.CostEstimate(
        flops=4 * R * N,
        transcendentals=0,
        bytes_accessed=2 * R * N * itemsize + nr * nc * tn * 4,
    )

    partials = pl.pallas_call(
        kernel,
        out_shape=jax.ShapeDtypeStruct((nr, nc, 1, tn), jnp.float32),
        grid_spec=grid_spec,
        compiler_params=pltpu.CompilerParams(
            dimension_semantics=("parallel", "parallel"),
            vmem_limit_bytes=_VMEM_LIMIT_BYTES,
        ),
        cost_estimate=cost,
    )(w_row, o, t)

    # Final reduction of the tiny lane-dense partials (padding lanes/rows are exactly zero).
    return jnp.sum(partials)


if __name__ == "__main__":
    key = jax.random.PRNGKey(0)
    k1, k2, k3, k4 = jax.random.split(key, 4)

    # Main case: (batch, num_sources, freq_bins, time_steps)
    B, S, F, T = 2, 4, 16, 16
    outputs = jax.random.normal(k1, (B, S, F, T), dtype=jnp.float32)
    targets = jax.random.normal(k2, (B, S, F, T), dtype=jnp.float32)
    weights = jnp.array([1.0, 2.0, 3.0, 4.0], dtype=jnp.float32)
    w_norm = weights / jnp.sum(weights)

    loss_l1 = multi_source_loss(outputs, targets, weights, distance="l1")
    jax.block_until_ready(loss_l1)
    ref_l1 = sum(
        w_norm[i] * jnp.mean(jnp.abs(outputs[:, i] - targets[:, i])) for i in range(S)
    )
    assert jnp.allclose(loss_l1, ref_l1, atol=1e-5, rtol=1e-5), (loss_l1, ref_l1)

    loss_l2 = multi_source_loss(outputs, targets, weights, distance="l2")
    jax.block_until_ready(loss_l2)
    ref_l2 = sum(
        w_norm[i] * jnp.mean((outputs[:, i] - targets[:, i]) ** 2) for i in range(S)
    )
    assert jnp.allclose(loss_l2, ref_l2, atol=1e-5, rtol=1e-5), (loss_l2, ref_l2)

    # Exercise the lane-padding path (F*T not a multiple of 128) and non-multiple-of-8 rows.
    B2, S2, F2, T2 = 2, 3, 16, 10
    o2 = jax.random.normal(k3, (B2, S2, F2, T2), dtype=jnp.float32)
    t2 = jax.random.normal(k4, (B2, S2, F2, T2), dtype=jnp.float32)
    w2 = jnp.array([0.5, 1.5, 2.0], dtype=jnp.float32)
    w2n = w2 / jnp.sum(w2)
    loss_pad = multi_source_loss(o2, t2, w2, distance="l1")
    jax.block_until_ready(loss_pad)
    ref_pad = sum(
        w2n[i] * jnp.mean(jnp.abs(o2[:, i] - t2[:, i])) for i in range(S2)
    )
    assert jnp.allclose(loss_pad, ref_pad, atol=1e-5, rtol=1e-5), (loss_pad, ref_pad)

    # Exercise the 3-D (no batch) path, mirroring the PyTorch `outputs.dim() == 3` branch.
    loss_3d = multi_source_loss(o2[0], t2[0], w2, distance="l2")
    jax.block_until_ready(loss_3d)
    ref_3d = sum(
        w2n[i] * jnp.mean((o2[0, i] - t2[0, i]) ** 2) for i in range(S2)
    )
    assert jnp.allclose(loss_3d, ref_3d, atol=1e-5, rtol=1e-5), (loss_3d, ref_3d)

    # bf16 inputs hit the dtype-aware block-size path.
    loss_bf16 = multi_source_loss(outputs.astype(jnp.bfloat16),
                                  targets.astype(jnp.bfloat16), weights, distance="l1")
    jax.block_until_ready(loss_bf16)
    assert jnp.allclose(loss_bf16, ref_l1, atol=2e-2, rtol=2e-2), (loss_bf16, ref_l1)

    print("KERNEL_OK")
</pallas_src>

<mosaic_0001>
module attributes {stable_mosaic.version = 11 : i64} {
  func.func @kernel(%arg0: i32, %arg1: i32, %arg2: memref<8x1xf32, #tpu.memory_space<vmem>>, %arg3: memref<8x128xf32, #tpu.memory_space<vmem>>, %arg4: memref<8x128xf32, #tpu.memory_space<vmem>>, %arg5: memref<1x1x1x128xf32, #tpu.memory_space<vmem>>) attributes {dimension_semantics = [#tpu.dimension_semantics<parallel>, #tpu.dimension_semantics<parallel>], iteration_bounds = array<i64: 1, 2>, scalar_prefetch = 0 : i64, scratch_operands = 0 : i64, tpu.core_type = #tpu.core_type<tc>, window_params = [{transform_indices = @transform_0, window_bounds = array<i64: 8, 1>}, {transform_indices = @transform_1, window_bounds = array<i64: 8, 128>}, {transform_indices = @transform_2, window_bounds = array<i64: 8, 128>}, {transform_indices = @transform_3, window_bounds = array<i64: 1, 1, 1, 128>}]} {
    %c0 = arith.constant 0 : index
    %c0_0 = arith.constant 0 : index
    %0 = vector.load %arg3[%c0, %c0_0] : memref<8x128xf32, #tpu.memory_space<vmem>>, vector<8x128xf32>
    %c0_1 = arith.constant 0 : index
    %c0_2 = arith.constant 0 : index
    %1 = vector.load %arg4[%c0_1, %c0_2] : memref<8x128xf32, #tpu.memory_space<vmem>>, vector<8x128xf32>
    %2 = arith.subf %0, %1 : vector<8x128xf32>
    %3 = math.absf %2 : vector<8x128xf32>
    %c0_3 = arith.constant 0 : index
    %c0_4 = arith.constant 0 : index
    %4 = vector.load %arg2[%c0_3, %c0_4] : memref<8x1xf32, #tpu.memory_space<vmem>>, vector<8x1xf32>
    %5 = vector.broadcast %4 : vector<8x1xf32> to vector<8x128xf32>
    %6 = arith.mulf %5, %3 : vector<8x128xf32>
    %cst = arith.constant dense<0.000000e+00> : vector<128xf32>
    %7 = vector.multi_reduction <add>, %6, %cst [0] : vector<8x128xf32> to vector<128xf32>
    %8 = vector.shape_cast %7 : vector<128xf32> to vector<1x128xf32>
    %c0_5 = arith.constant 0 : index
    %c0_6 = arith.constant 0 : index
    %c0_7 = arith.constant 0 : index
    %c0_8 = arith.constant 0 : index
    %9 = vector.load %arg5[%c0_5, %c0_6, %c0_7, %c0_8] : memref<1x1x1x128xf32, #tpu.memory_space<vmem>>, vector<1x1x1x128xf32>
    %10 = vector.shape_cast %9 : vector<1x1x1x128xf32> to vector<1x128xf32>
    %11 = vector.shape_cast %8 : vector<1x128xf32> to vector<1x1x1x128xf32>
    tpu.vector_store %arg5[%c0_5, %c0_6, %c0_7, %c0_8], %11 {strides = array<i32>} : memref<1x1x1x128xf32, #tpu.memory_space<vmem>>, vector<1x1x1x128xf32>,
    return
  }
  func.func @transform_0(%arg0: i32, %arg1: i32) -> (i32, i32) {
    %c0_i32 = arith.constant 0 : i32
    %c0_i32_0 = arith.constant 0 : i32
    return %arg0, %c0_i32 : i32, i32
  }
  func.func @transform_1(%arg0: i32, %arg1: i32) -> (i32, i32) {
    %c0_i32 = arith.constant 0 : i32
    return %arg0, %arg1 : i32, i32
  }
  func.func @transform_2(%arg0: i32, %arg1: i32) -> (i32, i32) {
    %c0_i32 = arith.constant 0 : i32
    return %arg0, %arg1 : i32, i32
  }
  func.func @transform_3(%arg0: i32, %arg1: i32) -> (i32, i32, i32, i32) {
    %c0_i32 = arith.constant 0 : i32
    %c0_i32_0 = arith.constant 0 : i32
    %c0_i32_1 = arith.constant 0 : i32
    return %arg0, %arg1, %c0_i32, %c0_i32_0 : i32, i32, i32, i32
  }
}

</mosaic_0001>

<llo_original>
// kernel: tile.8
$region0: #{tile.8}
  #allocation0 [shape = 's32[1]{0}', space=sflag, size = 0x4, scoped, tag = 'scoped memory for tile.8']
  %s0 = inlined_call_operand.vmem [shape: f32[4], index: 0, kind: input, shape index: {}]
  %s1 = inlined_call_operand.vmem [shape: f32[2,4], index: 1, kind: output, shape index: {}]
  // Predicated region
  $region2: #{tile.8} parent=0 // pred_check
    _
  $region3: #{tile.8} parent=0 // pred_check_branch
    %3 = sbr.rel (0) target = $region5
  $region4: #{tile.8} parent=0 // pred_region
    _
  $region5: #{tile.8} parent=0 // pred_fallthru
    _
  %v4 = vld [vmem:[%s0] ss:$0 sm:$0xff]
  %5 = vst [vmem:[%s1] sm:$0x3] %v4

// kernel: tile.0
$region0: #{tile.0}
  %s0 = inlined_call_operand.vmem [shape: f32[2,4], index: 0, kind: input, shape index: {}]
  %s1 = inlined_call_operand.vmem [shape: f32[8,1], index: 1, kind: output, shape index: {}]
  $region1: #{tile.0} parent=0
    #allocation0 [shape = 'u8[4096]{0}', space=vmem, size = 0x1000, scoped, tag = 'scoped mem for input reshape']
    %s3 = sshllo.u32 0, 2
    %v4 = vld [vmem:[%s0] sm:%s3]
    %5 = vst [vmem:[#allocation0] sm:%s3] %v4
    %v6 = vld [vmem:[#allocation0] sm:$0x3]
    %vm7 = vcmask 7168
    %8 = vst.msk [vmem:[%s1] ss:$4 sm:$0x3] %vm7, %v6
    %v9 = vld [vmem:[#allocation0] sm:$0x3]
    %10 = vrot.lane.b32.xlu0 %v9, 127
    %v11 = vpop.permute.xlu0 %10
    %vm12 = vcmask 7168
    %s13 = scalar_lea.vmem %s1, 1
    %14 = vst.msk [vmem:[%s13] ss:$4 sm:$0x3] %vm12, %v11
    %v15 = vld [vmem:[#allocation0] sm:$0x3]
    %16 = vrot.lane.b32.xlu0 %v15, 126
    %v17 = vpop.permute.xlu0 %16
    %vm18 = vcmask 7168
    %s19 = scalar_lea.vmem %s1, 2
    %20 = vst.msk [vmem:[%s19] ss:$4 sm:$0x3] %vm18, %v17
    %v21 = vld [vmem:[#allocation0] sm:$0x3]
    %22 = vrot.lane.b32.xlu0 %v21, 125
    %v23 = vpop.permute.xlu0 %22
    %vm24 = vcmask 7168
    %s25 = scalar_lea.vmem %s1, 3
    %26 = vst.msk [vmem:[%s25] ss:$4 sm:$0x3] %vm24, %v23

// kernel: multi_source_loss.1
$region0: #{multi_source_loss.1}
  #allocation0 [shape = 'u32[]', space=smem, size = 0x4, offset = 0x4, fixed_abs, tag = 'smem constant byte address 0x4 - core index']
  #allocation1 [shape = 'u32[144,128]{1,0:T(1,128)}', space=vmem, size = 0x12000, scoped, tag = 'internal scratch']
  %s0 = inlined_call_operand.vmem [shape: f32[8,1], index: 0, kind: input, shape index: {}]
  %s1 = inlined_call_operand.vmem [shape: f32[8,256], index: 1, kind: input, shape index: {}]
  %s2 = inlined_call_operand.vmem [shape: f32[8,256], index: 2, kind: input, shape index: {}]
  %s3 = inlined_call_operand.vmem [shape: f32[1,2,1,128], index: 3, kind: output, shape index: {}]
  %s4 = sld [smem:[#allocation0]]
  $region45: #{multi_source_loss.1} parent=0
    _
  %s6 = ssub.s32 1, %s4
  %s7 = scalar_select 0, %s6, %s4
  loop: start=0, step=1, limit=4
  $region2: #{multi_source_loss.1} parent=0 // loop_pre_header
    _
  $region3: #{multi_source_loss.1} parent=0 // loop_header
    %s9 = sphi 0, %s13
    %p10 = scmp.ge.s32.totalorder %s9, 4
    %s16 = sphi 0, %s28
    %s17 = sphi 0, %s24
    %s18 = sphi 0, %s16
    %s19 = sphi 0, %s17
    %s20 = sphi 0, %s18
    %s21 = sphi 0, %s19
    %s31 = sphi 0, %s33
    %s34 = sphi 0, %s31
    %s35 = sphi 0, %s34
    %s51 = sphi 0, %s35
    %s59 = sphi 0, %s61
    %s62 = sphi 0, %s59
    %s63 = sphi 0, %s62
    %s79 = sphi 0, %s63
    %s87 = sphi 0, %s89
    %s90 = sphi 0, %s87
    %s91 = sphi 0, %s90
    %s107 = sphi 0, %s91
    %s115 = sphi 0, %s117
    %s118 = sphi 0, %s115
    %s119 = sphi 0, %s118
    %s135 = sphi 0, %s119
  $region4: #{multi_source_loss.1} parent=0 // loop_header_branch
    %12 = sbr.rel (%p10) target = $region8
  $region5: #{multi_source_loss.1} parent=0 // loop_body
    %s14 = ssub.s32 %s9, 1
    %s15 = ssub.s32 %s9, 2
    %s22 = sadd.s32 1, %s17
    %p23 = scmp.ge.s32.totalorder %s22, 2
    %s24 = scalar_select %p23, 0, %s22
    %s25 = sadd.s32 1, %s16
    %s26 = scalar_select %p23, %s25, %s16
    %p27 = scmp.ge.s32.totalorder %s26, 1
    %s28 = scalar_select %p27, 0, %s26
    %s29 = ssub.s32 %s16, %s28
    %p30 = scmp.eq.s32.totalorder %s29, 0
    %s32 = sadd.s32 %s31, 1
    %s33 = scalar_select %p30, %s31, %s32
    %p36 = pneg %p30
    %p37 = scmp.eq.s32.totalorder %s9, 1
    %p38 = por %p36, %p37
    %p39 = scmp.ne.s32.totalorder %s31, %s34
    %p40 = scmp.eq.s32.totalorder %s9, 0
    %p41 = por %p39, %p40
    %p42 = scmp.ne.s32.totalorder %s31, %s34
    %p43 = scmp.eq.s32.totalorder %s14, 1
    %p44 = por %p42, %p43
    %p45 = scmp.ne.s32.totalorder %s34, %s35
    %p46 = scmp.eq.s32.totalorder %s14, 0
    %p47 = por %p45, %p46
    %p48 = scmp.ne.s32.totalorder %s34, %s35
    %p49 = scmp.eq.s32.totalorder %s15, 1
    %p50 = por %p48, %p49
    %p52 = scmp.ne.s32.totalorder %s35, %s51
    %p53 = scmp.eq.s32.totalorder %s15, 0
    %p54 = por %p52, %p53
    %s55 = ssub.s32 %s16, %s28
    %s56 = ssub.s32 %s17, %s24
    %s57 = sor.u32 %s55, %s56
    %p58 = scmp.eq.s32.totalorder %s57, 0
    %s60 = sadd.s32 %s59, 1
    %s61 = scalar_select %p58, %s59, %s60
    %p64 = pneg %p58
    %p65 = scmp.eq.s32.totalorder %s9, 1
    %p66 = por %p64, %p65
    %p67 = scmp.ne.s32.totalorder %s59, %s62
    %p68 = scmp.eq.s32.totalorder %s9, 0
    %p69 = por %p67, %p68
    %p70 = scmp.ne.s32.totalorder %s59, %s62
    %p71 = scmp.eq.s32.totalorder %s14, 1
    %p72 = por %p70, %p71
    %p73 = scmp.ne.s32.totalorder %s62, %s63
    %p74 = scmp.eq.s32.totalorder %s14, 0
    %p75 = por %p73, %p74
    %p76 = scmp.ne.s32.totalorder %s62, %s63
    %p77 = scmp.eq.s32.totalorder %s15, 1
    %p78 = por %p76, %p77
    %p80 = scmp.ne.s32.totalorder %s63, %s79
    %p81 = scmp.eq.s32.totalorder %s15, 0
    %p82 = por %p80, %p81
    %s83 = ssub.s32 %s16, %s28
    %s84 = ssub.s32 %s17, %s24
    %s85 = sor.u32 %s83, %s84
    %p86 = scmp.eq.s32.totalorder %s85, 0
    %s88 = sadd.s32 %s87, 1
    %s89 = scalar_select %p86, %s87, %s88
    %p92 = pneg %p86
    %p93 = scmp.eq.s32.totalorder %s9, 1
    %p94 = por %p92, %p93
    %p95 = scmp.ne.s32.totalorder %s87, %s90
    %p96 = scmp.eq.s32.totalorder %s9, 0
    %p97 = por %p95, %p96
    %p98 = scmp.ne.s32.totalorder %s87, %s90
    %p99 = scmp.eq.s32.totalorder %s14, 1
    %p100 = por %p98, %p99
    %p101 = scmp.ne.s32.totalorder %s90, %s91
    %p102 = scmp.eq.s32.totalorder %s14, 0
    %p103 = por %p101, %p102
    %p104 = scmp.ne.s32.totalorder %s90, %s91
    %p105 = scmp.eq.s32.totalorder %s15, 1
    %p106 = por %p104, %p105
    %p108 = scmp.ne.s32.totalorder %s91, %s107
    %p109 = scmp.eq.s32.totalorder %s15, 0
    %p110 = por %p108, %p109
    %s111 = ssub.s32 %s16, %s28
    %s112 = ssub.s32 %s17, %s24
    %s113 = sor.u32 %s111, %s112
    %p114 = scmp.eq.s32.totalorder %s113, 0
    %s116 = sadd.s32 %s115, 1
    %s117 = scalar_select %p114, %s115, %s116
    %p120 = pneg %p114
    %p121 = scmp.eq.s32.totalorder %s9, 1
    %p122 = por %p120, %p121
    %p123 = scmp.ne.s32.totalorder %s115, %s118
    %p124 = scmp.eq.s32.totalorder %s9, 0
    %p125 = por %p123, %p124
    %p126 = scmp.ne.s32.totalorder %s115, %s118
    %p127 = scmp.eq.s32.totalorder %s14, 1
    %p128 = por %p126, %p127
    %p129 = scmp.ne.s32.totalorder %s118, %s119
    %p130 = scmp.eq.s32.totalorder %s14, 0
    %p131 = por %p129, %p130
    %p132 = scmp.ne.s32.totalorder %s118, %s119
    %p133 = scmp.eq.s32.totalorder %s15, 1
    %p134 = por %p132, %p133
    %p136 = scmp.ne.s32.totalorder %s119, %s135
    %p137 = scmp.eq.s32.totalorder %s15, 0
    %p138 = por %p136, %p137
    %p139 = scmp.le.s32.totalorder 1, %s9
    %p140 = scmp.lt.s32.totalorder %s9, 3
    %p141 = pnand %p139, %p140
    %p142 = pneg %p141
    // Predicated region
    $region9: #{multi_source_loss.1} parent=5 // pred_check
      _
    $region10: #{multi_source_loss.1} parent=5 // pred_check_branch
      %144 = sbr.rel (%p141) target = $region12
    $region11: #{multi_source_loss.1} parent=5 // pred_region
      %s145 = ssub.s32 %s9, 1
      // Predicated region
      $region13: #{multi_source_loss.1} parent=11 // pred_check
        %p146 = pneg %p47
      $region14: #{multi_source_loss.1} parent=11 // pred_check_branch
        %148 = sbr.rel (%p146) target = $region16
      $region15: #{multi_source_loss.1} parent=11 // pred_region
        %p149 = scmp.lt.s32.totalorder %s18, 0
        %s150 = scalar_select %p149, %s18, 0
        %s151 = smul.addr %s150, 8
        %s152 = scalar_lea.vmem %s0, %s151
      $region16: #{multi_source_loss.1} parent=11 // pred_fallthru
        _
    $region12: #{multi_source_loss.1} parent=5 // pred_fallthru
      _
    %p153 = scmp.lt.s32.totalorder %s9, 2
    // Predicated region
    $region17: #{multi_source_loss.1} parent=5 // pred_check
      %p154 = pneg %p153
    $region18: #{multi_source_loss.1} parent=5 // pred_check_branch
      %156 = sbr.rel (%p154) target = $region20
    $region19: #{multi_source_loss.1} parent=5 // pred_region
      // Predicated region
      $region21: #{multi_source_loss.1} parent=19 // pred_check
        %p157 = pneg %p69
      $region22: #{multi_source_loss.1} parent=19 // pred_check_branch
        %159 = sbr.rel (%p157) target = $region24
      $region23: #{multi_source_loss.1} parent=19 // pred_region
        %p160 = scmp.lt.s32.totalorder %s16, 0
        %s161 = scalar_select %p160, %s16, 0
        %p162 = scmp.lt.s32.totalorder %s17, 1
        %s163 = scalar_select %p162, %s17, 1
        %s164 = smul.addr %s161, 2
        %s165 = sadd.s32 %s163, %s164
        %s166 = smul.addr %s165, 8
        %s167 = scalar_lea.vmem %s1, %s166
      $region24: #{multi_source_loss.1} parent=19 // pred_fallthru
        _
      // Predicated region
      $region25: #{multi_source_loss.1} parent=19 // pred_check
        %p168 = pneg %p97
      $region26: #{multi_source_loss.1} parent=19 // pred_check_branch
        %170 = sbr.rel (%p168) target = $region28
      $region27: #{multi_source_loss.1} parent=19 // pred_region
        %p171 = scmp.lt.s32.totalorder %s16, 0
        %s172 = scalar_select %p171, %s16, 0
        %p173 = scmp.lt.s32.totalorder %s17, 1
        %s174 = scalar_select %p173, %s17, 1
        %s175 = smul.addr %s172, 2
        %s176 = sadd.s32 %s174, %s175
        %s177 = smul.addr %s176, 8
        %s178 = scalar_lea.vmem %s2, %s177
      $region28: #{multi_source_loss.1} parent=19 // pred_fallthru
        _
    $region20: #{multi_source_loss.1} parent=5 // pred_fallthru
      _
    %p179 = scmp.le.s32.totalorder 1, %s9
    %p180 = scmp.lt.s32.totalorder %s9, 3
    %p181 = pnand %p179, %p180
    %p182 = pneg %p181
    // Predicated region
    $region29: #{multi_source_loss.1} parent=5 // pred_check
      _
    $region30: #{multi_source_loss.1} parent=5 // pred_check_branch
      %184 = sbr.rel (%p181) target = $region32
    $region31: #{multi_source_loss.1} parent=5 // pred_region
      %s185 = ssub.s32 %s9, 1
      %p186 = scmp.lt.s32.totalorder %s18, 0
      %s187 = scalar_select %p186, %s18, 0
      %s188 = smul.addr %s187, 8
      %s189 = scalar_lea.vmem %s0, %s188
      %p190 = pneg %p47
      %p191 = pneg %p44
      %p192 = scmp.lt.s32.totalorder %s18, 0
      %s193 = scalar_select %p192, %s18, 0
      %p194 = scmp.lt.s32.totalorder %s19, 1
      %s195 = scalar_select %p194, %s19, 1
      %s196 = smul.addr %s193, 2
      %s197 = sadd.s32 %s195, %s196
      %s198 = smul.addr %s197, 8
      %s199 = scalar_lea.vmem %s1, %s198
      %p200 = pneg %p75
      %p201 = pneg %p72
      %p202 = scmp.lt.s32.totalorder %s18, 0
      %s203 = scalar_select %p202, %s18, 0
      %p204 = scmp.lt.s32.totalorder %s19, 1
      %s205 = scalar_select %p204, %s19, 1
      %s206 = smul.addr %s203, 2
      %s207 = sadd.s32 %s205, %s206
      %s208 = smul.addr %s207, 8
      %s209 = scalar_lea.vmem %s2, %s208
      %p210 = pneg %p103
      %p211 = pneg %p100
      %p212 = pneg %p131
      %p213 = pneg %p128
      %p214 = scmp.lt.s32.totalorder %s18, 0
      %s215 = scalar_select %p214, %s18, 0
      %p216 = scmp.lt.s32.totalorder %s19, 1
      %s217 = scalar_select %p216, %s19, 1
      %s218 = smul.addr %s215, 2
      %s219 = sadd.s32 %s217, %s218
      %s220 = scalar_lea.vmem %s3, %s219
      %p221 = scmp.lt.s32.totalorder %s18, 0
      %s222 = scalar_select %p221, %s18, 0
      %s223 = smul.addr %s222, 8
      %s224 = scalar_lea.vmem %s0, %s223
      %p225 = scmp.lt.s32.totalorder %s18, 0
      %s226 = scalar_select %p225, %s18, 0
      %p227 = scmp.lt.s32.totalorder %s19, 1
      %s228 = scalar_select %p227, %s19, 1
      %s229 = smul.addr %s226, 2
      %s230 = sadd.s32 %s228, %s229
      %s231 = smul.addr %s230, 8
      %s232 = scalar_lea.vmem %s1, %s231
      %p233 = scmp.lt.s32.totalorder %s18, 0
      %s234 = scalar_select %p233, %s18, 0
      %p235 = scmp.lt.s32.totalorder %s19, 1
      %s236 = scalar_select %p235, %s19, 1
      %s237 = smul.addr %s234, 2
      %s238 = sadd.s32 %s236, %s237
      %s239 = smul.addr %s238, 8
      %s240 = scalar_lea.vmem %s2, %s239
      %p241 = scmp.lt.s32.totalorder %s18, 0
      %s242 = scalar_select %p241, %s18, 0
      %p243 = scmp.lt.s32.totalorder %s19, 1
      %s244 = scalar_select %p243, %s19, 1
      %s245 = smul.addr %s242, 2
      %s246 = sadd.s32 %s244, %s245
      %s247 = scalar_lea.vmem %s3, %s246
      %v248 = vld [vmem:[%s232] sm:$0xff]
      %v249 = vld [vmem:[%s240] sm:$0xff]
      %v250 = vsub.f32 %v248, %v249
      %v251 = vand.u32 2147483647, %v250
      %v252 = vld [vmem:[%s224] sm:$0xff]
      %254 = vset.pattern.permute.xlu0 0
      %255 = vperm.xlu0 %254, %v252
      %v256 = vpop.permute.xlu0 %255
      %v258 = vmul.f32 %v256, %v251
      %v259 = vrot.slane %v258, 4
      %v260 = vadd.f32 %v258, %v259
      %v261 = vrot.slane %v260, 2
      %v262 = vadd.f32 %v260, %v261
      %v263 = vrot.slane %v262, 1
      %v264 = vadd.f32 %v262, %v263
      %265 = vst [vmem:[%s247] sm:$0x1] %v264
      %p266 = scmp.lt.s32.totalorder %s18, 0
      %s267 = scalar_select %p266, %s18, 0
      %p268 = scmp.lt.s32.totalorder %s19, 1
      %s269 = scalar_select %p268, %s19, 1
      %s270 = smul.addr %s267, 2
      %s271 = sadd.s32 %s269, %s270
      %s272 = scalar_lea.vmem %s3, %s271
      // Predicated region
      $region33: #{multi_source_loss.1} parent=31 // pred_check
        %p273 = pneg %p128
      $region34: #{multi_source_loss.1} parent=31 // pred_check_branch
        %275 = sbr.rel (%p273) target = $region36
      $region35: #{multi_source_loss.1} parent=31 // pred_region
        _
      $region36: #{multi_source_loss.1} parent=31 // pred_fallthru
        _
    $region32: #{multi_source_loss.1} parent=5 // pred_fallthru
      _
    %p276 = scmp.le.s32.totalorder 2, %s9
    // Predicated region
    $region37: #{multi_source_loss.1} parent=5 // pred_check
      %p277 = pneg %p276
    $region38: #{multi_source_loss.1} parent=5 // pred_check_branch
      %279 = sbr.rel (%p277) target = $region40
    $region39: #{multi_source_loss.1} parent=5 // pred_region
      %s280 = ssub.s32 %s9, 2
      // Predicated region
      $region41: #{multi_source_loss.1} parent=39 // pred_check
        %p281 = pneg %p134
      $region42: #{multi_source_loss.1} parent=39 // pred_check_branch
        %283 = sbr.rel (%p281) target = $region44
      $region43: #{multi_source_loss.1} parent=39 // pred_region
        %p284 = scmp.lt.s32.totalorder %s20, 0
        %s285 = scalar_select %p284, %s20, 0
        %p286 = scmp.lt.s32.totalorder %s21, 1
        %s287 = scalar_select %p286, %s21, 1
        %s288 = smul.addr %s285, 2
        %s289 = sadd.s32 %s287, %s288
        %s290 = scalar_lea.vmem %s3, %s289
      $region44: #{multi_source_loss.1} parent=39 // pred_fallthru
        _
    $region40: #{multi_source_loss.1} parent=5 // pred_fallthru
      _
  $region6: #{multi_source_loss.1} parent=0 // loop_footer
    %s13 = sadd.s32 1, %s9
  $region7: #{multi_source_loss.1} parent=0 // loop_footer_branch
    %8 = sbr.rel target = $region3
  $region8: #{multi_source_loss.1} parent=0 // loop_exit
    _

</llo_original>
